<compile_context>
chip_gen: v7x
topology: tpu7x:2x2x1
jax: 0.10.0
libtpu: 0.0.40
codegen_flags: <defaults>
</compile_context>

<pallas_src>
import math

import jax
import jax.numpy as jnp
from jax import lax
from jax.experimental import pallas as pl
from jax.experimental.pallas import tpu as pltpu


# ----------------------------------------------------------------------------
# Kernel
# ----------------------------------------------------------------------------
def _state_ex_kernel(centers_ref, x_ref, state_ref, assign_ref):
    # centers_ref: (K, C)             norm folded in (wrapper), matmul dtype
    # x_ref:       (Bblk, Tblk, C)    matmul dtype
    # state_ref:   (Bblk, K, C) f32   VMEM-resident accumulator over the T axis
    # assign_ref:  (Bblk, Tblk, K) f32
    t_idx = pl.program_id(1)

    @pl.when(t_idx == 0)
    def _init():
        state_ref[...] = jnp.zeros_like(state_ref)

    x = x_ref[...]
    centers = centers_ref[...]
    bblk, tblk, _ = x.shape
    prec = lax.Precision.HIGHEST if x.dtype == jnp.float32 else None

    # Scores for the whole block in ONE contraction (contract on C; both
    # operands contract their last dim -> no operand transposes). Result is
    # lane-dense: K on sublanes, Bblk*Tblk on lanes.
    x2d = x.reshape(bblk * tblk, x.shape[-1])
    s = lax.dot_general(
        centers, x2d,
        dimension_numbers=(((1,), (1,)), ((), ())),
        precision=prec,
        preferred_element_type=jnp.float32,
    )                                                     # (K, Bblk*Tblk)
    # (x . c')^2 == (x . c)^2 / ||c||   (1/||c|| folded into c' in the wrapper)
    s = s * s

    # Softmax over clusters (K = sublane axis), all f32 on the VPU/XLU.
    m = jnp.max(s, axis=0, keepdims=True)                 # (1, Bblk*Tblk)
    e = jnp.exp(s - m)
    denom = jnp.sum(e, axis=0, keepdims=True)
    inv = pl.reciprocal(denom, approx=True)               # EUP slot (co-issues)
    inv = inv * (2.0 - denom * inv)                       # one Newton step -> ~exact
    a = e * inv                                           # (K, Bblk*Tblk)
    a_mm = a.astype(x.dtype)

    # Per batch element: emit the PyTorch-layout (T, K) assignment tile via an
    # XLU transpose (cheap next to the HBM-bound DMA, avoids a second HBM pass
    # over the assignment), and accumulate the state in natural MXU form.
    for b in range(bblk):                                 # static unroll
        sl = slice(b * tblk, (b + 1) * tblk)
        assign_ref[b, :, :] = a[:, sl].T.astype(assign_ref.dtype)
        state_ref[b, :, :] += lax.dot_general(
            a_mm[:, sl], x[b],
            dimension_numbers=(((1,), (0,)), ((), ())),
            precision=prec,
            preferred_element_type=jnp.float32,
        ).astype(state_ref.dtype)


# ----------------------------------------------------------------------------
# Wrapper helpers
# ----------------------------------------------------------------------------
def _fold_norm(cluster_centers):
    # c' = c * (||c||^2 + eps)^(-1/4)  so that  (x . c')^2 == (x . c)^2 / ||c||.
    # eps guards an all-zero (collapsed) cluster center (PyTorch would NaN).
    sq_norm = jnp.sum(cluster_centers * cluster_centers, axis=-1, keepdims=True)
    return cluster_centers * (sq_norm + 1e-30) ** -0.25


def _round_up(x, m):
    return ((x + m - 1) // m) * m


def _vmem_limit_bytes():
    # Derive the scoped-VMEM limit per generation: ~3/4 of physical, capped at
    # 96 MiB (v5e/v6e: 128 MiB physical -> 96 MiB; v7x: 64 MiB -> 48 MiB).
    try:
        cap = int(pltpu.get_tpu_info().vmem_capacity_bytes)
    except Exception:
        cap = 64 * 1024 * 1024           # assume the most restrictive generation
    return min(cap * 3 // 4, 96 * 1024 * 1024)


def _choose_tiling(B, T, C, K, x_item, vmem_limit, block_b, block_t):
    """Pick (block_b, block_t) against ALL double-buffered VMEM residents."""

    def residency(bb, bt):
        x_blk = bb * bt * C * x_item           # pipelined input block
        a_blk = bb * bt * K * 4                # pipelined assignment block
        s_blk = bb * K * C * 4                 # resident state block
        cen = K * C * x_item                   # replicated centers
        return 2 * (x_blk + a_blk + s_blk + cen)   # double-buffered

    budget = int(0.85 * vmem_limit)

    if block_t is None:
        # Target ~8 MiB x blocks: the kernel is HBM bound and >=512-wide tiles
        # reach ~85% of the HBM roofline (vs ~29% at 128-wide).
        target_x = 8 * 1024 * 1024
        bt_cap = max(8, (target_x // max(C * x_item, 1)) // 8 * 8)
        block_t = min(_round_up(T, 8), bt_cap)
    block_t = max(8, _round_up(block_t, 8))
    while residency(1, block_t) > budget and block_t > 8:
        block_t = max(8, _round_up(block_t // 2, 8))

    if block_b is None:
        block_b = 1
        for cand in range(2, B + 1):
            if B >= 2 and -(-B // cand) < 2:
                # Keep >= 2 batch blocks so the "parallel" axis feeds both
                # TensorCores on v7x (no-op on single-TC v5e/v6e).
                break
            if residency(cand, block_t) > budget:
                break
            block_b = cand

    assert residency(block_b, block_t) <= vmem_limit, (
        f"tiling block_b={block_b}, block_t={block_t} needs "
        f"{residency(block_b, block_t)} B of VMEM > limit {vmem_limit} B")
    return block_b, block_t


# ----------------------------------------------------------------------------
# Public forward
# ----------------------------------------------------------------------------
def state_ex_forward(batch, cluster_centers, *, block_b=None, block_t=None,
                     matmul_dtype=jnp.bfloat16):
    """StateEx.forward.

    batch: [B, T, C] float32, cluster_centers: [K, C] float32.
    Returns (state_repr [B, K, C] f32, assignment [B, T, K] f32).

    matmul_dtype: dtype of the x HBM stream and of both MXU contractions
    (softmax math is always f32).  bf16 (default) halves the HBM traffic this
    kernel is bound by; pass jnp.float32 for full-precision results.
    """
    B, T, C = batch.shape
    K, C2 = cluster_centers.shape
    assert C == C2

    centers_scaled = _fold_norm(cluster_centers.astype(jnp.float32))
    x_in = batch.astype(matmul_dtype)
    c_in = centers_scaled.astype(matmul_dtype)
    x_item = jnp.dtype(matmul_dtype).itemsize

    vmem_limit = _vmem_limit_bytes()
    block_b, block_t = _choose_tiling(B, T, C, K, x_item, vmem_limit,
                                      block_b, block_t)

    # Zero-pad awkward B / T: padded rows have x == 0, so their (uniform)
    # assignments contribute nothing to the state and are sliced off below.
    B_pad = _round_up(B, block_b)
    T_pad = _round_up(T, block_t)
    if (B_pad, T_pad) != (B, T):
        x_in = jnp.pad(x_in, ((0, B_pad - B), (0, T_pad - T), (0, 0)))

    grid = (B_pad // block_b, T_pad // block_t)

    cost = pl.CostEstimate(
        flops=4 * B_pad * T_pad * C * K,
        transcendentals=B_pad * T_pad * K,
        bytes_accessed=(B_pad * T_pad * C * x_item + K * C * x_item
                        + B_pad * K * C * 4 + B_pad * T_pad * K * 4),
    )

    state_repr, assignment = pl.pallas_call(
        _state_ex_kernel,
        out_shape=(
            jax.ShapeDtypeStruct((B_pad, K, C), jnp.float32),       # state_repr
            jax.ShapeDtypeStruct((B_pad, T_pad, K), jnp.float32),   # assignment
        ),
        grid=grid,
        in_specs=[
            pl.BlockSpec((K, C), lambda b, t: (0, 0)),              # centers (resident)
            # TODO(synk): if profiling on v7x still shows exposed DMA, add
            # pipeline_mode=pl.Buffered(3) to this x BlockSpec.
            pl.BlockSpec((block_b, block_t, C), lambda b, t: (b, t, 0)),
        ],
        out_specs=(
            # Same block index for every t -> VMEM-resident accumulator across
            # the "arbitrary" (reduction) T axis.
            pl.BlockSpec((block_b, K, C), lambda b, t: (b, 0, 0)),
            pl.BlockSpec((block_b, block_t, K), lambda b, t: (b, t, 0)),
        ),
        compiler_params=pltpu.CompilerParams(
            dimension_semantics=("parallel", "arbitrary"),
            vmem_limit_bytes=vmem_limit,
        ),
        cost_estimate=cost,
    )(c_in, x_in)

    if (B_pad, T_pad) != (B, T):
        state_repr = state_repr[:B]
        assignment = assignment[:B, :T]
    return state_repr, assignment


# ----------------------------------------------------------------------------
# References & demo
# ----------------------------------------------------------------------------
def make_cluster_centers(key, num_states, hidden_dim):
    # Deterministic Xavier-uniform init (matches nn.init.xavier_uniform_ bounds).
    bound = math.sqrt(6.0 / (num_states + hidden_dim))
    return jax.random.uniform(key, (num_states, hidden_dim), jnp.float32,
                              minval=-bound, maxval=bound)


def _reference(batch, centers):
    # Pure-JAX mirror of StateEx.forward (project_assignment=True).
    hi = lax.Precision.HIGHEST
    s = jnp.einsum("btc,kc->btk", batch, centers, precision=hi) ** 2
    soft = s / jnp.linalg.norm(centers, axis=-1)
    a = jax.nn.softmax(soft, axis=-1)
    state = jnp.einsum("btk,btc->bkc", a, batch, precision=hi)
    return state, a


def _reference_folded(batch, centers_scaled):
    # Mirror of the kernel's math given already-rounded (bf16) inputs, for
    # checking the bandwidth-optimized path with like-for-like numerics.
    hi = lax.Precision.HIGHEST
    s = jnp.einsum("btc,kc->btk", batch, centers_scaled, precision=hi) ** 2
    a = jax.nn.softmax(s, axis=-1)
    state = jnp.einsum("btk,btc->bkc", a, batch, precision=hi)
    return state, a


if __name__ == "__main__":
    # Small shapes consistent with the module: batch=2, seq=8, hidden=32, K=4.
    B, T, C, K = 2, 8, 32, 4
    key = jax.random.PRNGKey(0)
    k_x, k_c = jax.random.split(key)

    batch = jax.random.normal(k_x, (B, T, C), dtype=jnp.float32)
    centers = make_cluster_centers(k_c, K, C)

    ref_state, ref_assign = _reference(batch, centers)

    # Full-precision path (f32 HBM stream + full-precision MXU contractions).
    state_f32, assign_f32 = state_ex_forward(batch, centers,
                                             matmul_dtype=jnp.float32)
    jax.block_until_ready(state_f32)
    jax.block_until_ready(assign_f32)
    assert state_f32.shape == (B, K, C) and assign_f32.shape == (B, T, K)
    assert bool(jnp.allclose(assign_f32, ref_assign, atol=1e-3, rtol=1e-3))
    assert bool(jnp.allclose(state_f32, ref_state, atol=3e-3, rtol=3e-3))

    # Default bandwidth-optimized path (bf16 x stream / bf16 MXU, f32 softmax),
    # validated against a reference fed the same bf16-rounded inputs.
    state_bf, assign_bf = state_ex_forward(batch, centers)
    jax.block_until_ready(state_bf)
    jax.block_until_ready(assign_bf)
    xb = batch.astype(jnp.bfloat16).astype(jnp.float32)
    cb = _fold_norm(centers).astype(jnp.bfloat16).astype(jnp.float32)
    ref_state_bf, ref_assign_bf = _reference_folded(xb, cb)
    assert state_bf.shape == (B, K, C) and assign_bf.shape == (B, T, K)
    assert bool(jnp.all(jnp.isfinite(state_bf)))
    assert bool(jnp.all(jnp.isfinite(assign_bf)))
    assert bool(jnp.allclose(assign_bf.sum(-1), 1.0, atol=1e-3))
    assert bool(jnp.allclose(assign_bf, ref_assign_bf, atol=2e-2, rtol=2e-2))
    assert bool(jnp.allclose(state_bf, ref_state_bf, atol=6e-2, rtol=6e-2))

    print("KERNEL_OK")
</pallas_src>

<mosaic_0001>
module attributes {stable_mosaic.version = 11 : i64} {
  func.func @_state_ex_kernel(%arg0: i32, %arg1: i32, %arg2: memref<4x32xf32, #tpu.memory_space<vmem>>, %arg3: memref<1x8x32xf32, #tpu.memory_space<vmem>>, %arg4: memref<1x4x32xf32, #tpu.memory_space<vmem>>, %arg5: memref<1x8x4xf32, #tpu.memory_space<vmem>>) attributes {dimension_semantics = [#tpu.dimension_semantics<parallel>, #tpu.dimension_semantics<arbitrary>], iteration_bounds = array<i64: 2, 1>, scalar_prefetch = 0 : i64, scratch_operands = 0 : i64, tpu.core_type = #tpu.core_type<tc>, window_params = [{pipeline_mode = #tpu.pipeline_mode<synchronous>, transform_indices = @transform_0, window_bounds = array<i64: 4, 32>}, {transform_indices = @transform_1, window_bounds = array<i64: 1, 8, 32>}, {transform_indices = @transform_2, window_bounds = array<i64: 1, 4, 32>}, {transform_indices = @transform_3, window_bounds = array<i64: 1, 8, 4>}]} {
    %c0_i32 = arith.constant 0 : i32
    %0 = arith.cmpi eq, %arg1, %c0_i32 : i32
    %1 = arith.extui %0 : i1 to i32
    %c0_i32_0 = arith.constant 0 : i32
    %2 = arith.cmpi ne, %1, %c0_i32_0 : i32
    scf.if %2 {
      %cst_18 = arith.constant 0.000000e+00 : f32
      %34 = vector.broadcast %cst_18 : f32 to vector<1x4x32xf32>
      %c0_19 = arith.constant 0 : index
      %c0_20 = arith.constant 0 : index
      %c0_21 = arith.constant 0 : index
      %35 = vector.load %arg4[%c0_19, %c0_20, %c0_21] : memref<1x4x32xf32, #tpu.memory_space<vmem>>, vector<1x4x32xf32>
      tpu.vector_store %arg4[%c0_19, %c0_20, %c0_21], %34 {strides = array<i32>} : memref<1x4x32xf32, #tpu.memory_space<vmem>>, vector<1x4x32xf32>,
    } else {
    }
    %c0 = arith.constant 0 : index
    %c0_1 = arith.constant 0 : index
    %c0_2 = arith.constant 0 : index
    %3 = vector.load %arg3[%c0, %c0_1, %c0_2] : memref<1x8x32xf32, #tpu.memory_space<vmem>>, vector<1x8x32xf32>
    %c0_3 = arith.constant 0 : index
    %c0_4 = arith.constant 0 : index
    %4 = vector.load %arg2[%c0_3, %c0_4] : memref<4x32xf32, #tpu.memory_space<vmem>>, vector<4x32xf32>
    %5 = vector.shape_cast %3 : vector<1x8x32xf32> to vector<8x32xf32>
    %cst = arith.constant dense<0.000000e+00> : vector<4x8xf32>
    %6 = tpu.matmul %4, %5, %cst {dimension_numbers = #tpu.dot_dimension_numbers<[1], [1], [0], [0], [0, 0, 1, 0], [], []>, precision = #tpu.contract_precision<fp32>} : vector<4x32xf32>, vector<8x32xf32>, vector<4x8xf32> -> vector<4x8xf32>
    %7 = arith.mulf %6, %6 : vector<4x8xf32>
    %cst_5 = arith.constant dense<0xFF800000> : vector<8xf32>
    %8 = vector.multi_reduction <maximumf>, %7, %cst_5 [0] : vector<4x8xf32> to vector<8xf32>
    %9 = vector.shape_cast %8 : vector<8xf32> to vector<1x8xf32>
    %10 = vector.broadcast %9 : vector<1x8xf32> to vector<4x8xf32>
    %11 = arith.subf %7, %10 : vector<4x8xf32>
    %12 = math.exp %11 : vector<4x8xf32>
    %cst_6 = arith.constant dense<0.000000e+00> : vector<8xf32>
    %13 = vector.multi_reduction <add>, %12, %cst_6 [0] : vector<4x8xf32> to vector<8xf32>
    %14 = vector.shape_cast %13 : vector<8xf32> to vector<1x8xf32>
    %15 = tpu.reciprocal %14 {approx = true} : vector<1x8xf32> -> vector<1x8xf32>
    %16 = arith.mulf %14, %15 : vector<1x8xf32>
    %cst_7 = arith.constant 2.000000e+00 : f32
    %17 = vector.broadcast %cst_7 : f32 to vector<1x8xf32>
    %18 = arith.subf %17, %16 : vector<1x8xf32>
    %19 = arith.mulf %15, %18 : vector<1x8xf32>
    %20 = vector.broadcast %19 : vector<1x8xf32> to vector<4x8xf32>
    %21 = arith.mulf %12, %20 : vector<4x8xf32>
    %22 = tpu.transpose %21, [1, 0] : vector<4x8xf32> -> vector<8x4xf32>
    %c0_8 = arith.constant 0 : index
    %c0_9 = arith.constant 0 : index
    %c0_10 = arith.constant 0 : index
    %23 = vector.load %arg5[%c0_8, %c0_9, %c0_10] : memref<1x8x4xf32, #tpu.memory_space<vmem>>, vector<1x8x4xf32>
    %24 = vector.shape_cast %23 : vector<1x8x4xf32> to vector<8x4xf32>
    %25 = vector.shape_cast %22 : vector<8x4xf32> to vector<1x8x4xf32>
    tpu.vector_store %arg5[%c0_8, %c0_9, %c0_10], %25 {strides = array<i32>} : memref<1x8x4xf32, #tpu.memory_space<vmem>>, vector<1x8x4xf32>,
    %c0_11 = arith.constant 0 : index
    %c0_12 = arith.constant 0 : index
    %c0_13 = arith.constant 0 : index
    %26 = vector.load %arg4[%c0_11, %c0_12, %c0_13] : memref<1x4x32xf32, #tpu.memory_space<vmem>>, vector<1x4x32xf32>
    %27 = vector.shape_cast %26 : vector<1x4x32xf32> to vector<4x32xf32>
    %28 = vector.shape_cast %3 : vector<1x8x32xf32> to vector<8x32xf32>
    %cst_14 = arith.constant dense<0.000000e+00> : vector<4x32xf32>
    %29 = tpu.matmul %21, %28, %cst_14 {dimension_numbers = #tpu.dot_dimension_numbers<[1], [0], [0], [1], [0, 0, 1, 1], [], []>, precision = #tpu.contract_precision<fp32>} : vector<4x8xf32>, vector<8x32xf32>, vector<4x32xf32> -> vector<4x32xf32>
    %30 = arith.addf %27, %29 : vector<4x32xf32>
    %c0_15 = arith.constant 0 : index
    %c0_16 = arith.constant 0 : index
    %c0_17 = arith.constant 0 : index
    %31 = vector.load %arg4[%c0_15, %c0_16, %c0_17] : memref<1x4x32xf32, #tpu.memory_space<vmem>>, vector<1x4x32xf32>
    %32 = vector.shape_cast %31 : vector<1x4x32xf32> to vector<4x32xf32>
    %33 = vector.shape_cast %30 : vector<4x32xf32> to vector<1x4x32xf32>
    tpu.vector_store %arg4[%c0_15, %c0_16, %c0_17], %33 {strides = array<i32>} : memref<1x4x32xf32, #tpu.memory_space<vmem>>, vector<1x4x32xf32>,
    return
  }
  func.func @transform_0(%arg0: i32, %arg1: i32) -> (i32, i32) {
    %c0_i32 = arith.constant 0 : i32
    %c0_i32_0 = arith.constant 0 : i32
    %c0_i32_1 = arith.constant 0 : i32
    return %c0_i32, %c0_i32_0 : i32, i32
  }
  func.func @transform_1(%arg0: i32, %arg1: i32) -> (i32, i32, i32) {
    %c0_i32 = arith.constant 0 : i32
    %c0_i32_0 = arith.constant 0 : i32
    return %arg0, %arg1, %c0_i32 : i32, i32, i32
  }
  func.func @transform_2(%arg0: i32, %arg1: i32) -> (i32, i32, i32) {
    %c0_i32 = arith.constant 0 : i32
    %c0_i32_0 = arith.constant 0 : i32
    %c0_i32_1 = arith.constant 0 : i32
    return %arg0, %c0_i32, %c0_i32_0 : i32, i32, i32
  }
  func.func @transform_3(%arg0: i32, %arg1: i32) -> (i32, i32, i32) {
    %c0_i32 = arith.constant 0 : i32
    %c0_i32_0 = arith.constant 0 : i32
    return %arg0, %arg1, %c0_i32 : i32, i32, i32
  }
}

</mosaic_0001>

<llo_original>
// kernel: tpu_custom_call.1
$region0: #{tpu_custom_call.1}
  #allocation0 [shape = 'u32[]', space=smem, size = 0x4, offset = 0x4, fixed_abs, tag = 'smem constant byte address 0x4 - core index']
  #allocation1 [shape = 'u32[144,128]{1,0:T(1,128)}', space=vmem, size = 0x12000, scoped, tag = 'internal scratch']
  %s0 = inlined_call_operand.hbm [shape: f32[4,32], index: 0, kind: input, shape index: {}]
  %s1 = inlined_call_operand.hbm [shape: f32[2,8,32], index: 1, kind: input, shape index: {}]
  %s2 = inlined_call_operand.hbm [shape: f32[2,4,32], index: 2, kind: output, shape index: {0}]
  %s3 = inlined_call_operand.vmem [shape: f32[2,8,4], index: 3, kind: output, shape index: {1}]
  %4 = xla_tuple %s2, %s3
  %s5 = sld [smem:[#allocation0]]
  $region61: #{tpu_custom_call.1} parent=0
    _
  %s7 = ssub.s32 1, %s5
  %s8 = scalar_select 0, %s7, %s5
  $region1: #{tpu_custom_call.1} parent=0
    #allocation2 [shape = 'u8[2048]{0}', space=vmem, size = 0x800, scoped, tag = 'input window, operand 0, single buffered']
    #allocation3 [shape = 's32[2]{0}', space=sflag, size = 0x8, scoped, tag = 'scoped memory for tpu_custom_call.1']
    #allocation4 [shape = 's32[2]{0}', space=sflag, size = 0x8, scoped, tag = 'scoped memory for tpu_custom_call.1']
    #allocation5 [shape = 'u8[8192]{0}', space=vmem, size = 0x2000, scoped, tag = 'input window, operand 1']
    #allocation6 [shape = 's32[2]{0}', space=sflag, size = 0x8, scoped, tag = 'scoped memory for tpu_custom_call.1']
    #allocation7 [shape = 'u8[4096]{0}', space=vmem, size = 0x1000, scoped, tag = 'output window, operand 0']
    %9 = vsyncpa [#allocation3], 0
    %10 = vsyncpa [#allocation6], 0
    %s11 = scalar_lea.sflag [#allocation6], 1
    %12 = vsyncpa %s11, 0
    %13 = vsyncpa [#allocation4], 0
    %s14 = scalar_lea.sflag [#allocation4], 1
    %15 = vsyncpa %s14, 0
    loop: start=0, step=1, limit=4
    $region2: #{tpu_custom_call.1} parent=1 // loop_pre_header
      _
    $region3: #{tpu_custom_call.1} parent=1 // loop_header
      %s17 = sphi 0, %s21
      %p18 = scmp.ge.s32.totalorder %s17, 4
      %s24 = sphi 0, %s36
      %s25 = sphi 0, %s32
      %s26 = sphi 0, %s24
      %s27 = sphi 0, %s25
      %s28 = sphi 0, %s26
      %s29 = sphi 0, %s27
      %s37 = sphi 0, %s37
      %s39 = sphi 0, %s37
      %s40 = sphi 0, %s39
      %s54 = sphi 0, %s40
      %s62 = sphi 0, %s64
      %s65 = sphi 0, %s62
      %s66 = sphi 0, %s65
      %s82 = sphi 0, %s66
      %s88 = sphi 0, %s90
      %s91 = sphi 0, %s88
      %s92 = sphi 0, %s91
      %s108 = sphi 0, %s92
      %s116 = sphi 0, %s118
      %s119 = sphi 0, %s116
      %s120 = sphi 0, %s119
      %s136 = sphi 0, %s120
    $region4: #{tpu_custom_call.1} parent=1 // loop_header_branch
      %20 = sbr.rel (%p18) target = $region8
    $region5: #{tpu_custom_call.1} parent=1 // loop_body
      %s22 = ssub.s32 %s17, 1
      %s23 = ssub.s32 %s17, 2
      %s30 = sadd.s32 1, %s25
      %p31 = scmp.ge.s32.totalorder %s30, 1
      %s32 = scalar_select %p31, 0, %s30
      %s33 = sadd.s32 1, %s24
      %s34 = scalar_select %p31, %s33, %s24
      %p35 = scmp.ge.s32.totalorder %s34, 2
      %s36 = scalar_select %p35, 0, %s34
      %s38 = sadd.s32 %s37, 1
      %p41 = scmp.eq.s32.totalorder %s17, 1
      %p42 = scmp.ne.s32.totalorder %s37, %s39
      %p43 = scmp.eq.s32.totalorder %s17, 0
      %p44 = por %p42, %p43
      %p45 = scmp.ne.s32.totalorder %s37, %s39
      %p46 = scmp.eq.s32.totalorder %s22, 1
      %p47 = por %p45, %p46
      %p48 = scmp.ne.s32.totalorder %s39, %s40
      %p49 = scmp.eq.s32.totalorder %s22, 0
      %p50 = por %p48, %p49
      %p51 = scmp.ne.s32.totalorder %s39, %s40
      %p52 = scmp.eq.s32.totalorder %s23, 1
      %p53 = por %p51, %p52
      %p55 = scmp.ne.s32.totalorder %s40, %s54
      %p56 = scmp.eq.s32.totalorder %s23, 0
      %p57 = por %p55, %p56
      %s58 = ssub.s32 %s24, %s36
      %s59 = ssub.s32 %s25, %s32
      %s60 = sor.u32 %s58, %s59
      %p61 = scmp.eq.s32.totalorder %s60, 0
      %s63 = sadd.s32 %s62, 1
      %s64 = scalar_select %p61, %s62, %s63
      %p67 = pneg %p61
      %p68 = scmp.eq.s32.totalorder %s17, 1
      %p69 = por %p67, %p68
      %p70 = scmp.ne.s32.totalorder %s62, %s65
      %p71 = scmp.eq.s32.totalorder %s17, 0
      %p72 = por %p70, %p71
      %p73 = scmp.ne.s32.totalorder %s62, %s65
      %p74 = scmp.eq.s32.totalorder %s22, 1
      %p75 = por %p73, %p74
      %p76 = scmp.ne.s32.totalorder %s65, %s66
      %p77 = scmp.eq.s32.totalorder %s22, 0
      %p78 = por %p76, %p77
      %p79 = scmp.ne.s32.totalorder %s65, %s66
      %p80 = scmp.eq.s32.totalorder %s23, 1
      %p81 = por %p79, %p80
      %p83 = scmp.ne.s32.totalorder %s66, %s82
      %p84 = scmp.eq.s32.totalorder %s23, 0
      %p85 = por %p83, %p84
      %s86 = ssub.s32 %s24, %s36
      %p87 = scmp.eq.s32.totalorder %s86, 0
      %s89 = sadd.s32 %s88, 1
      %s90 = scalar_select %p87, %s88, %s89
      %p93 = pneg %p87
      %p94 = scmp.eq.s32.totalorder %s17, 1
      %p95 = por %p93, %p94
      %p96 = scmp.ne.s32.totalorder %s88, %s91
      %p97 = scmp.eq.s32.totalorder %s17, 0
      %p98 = por %p96, %p97
      %p99 = scmp.ne.s32.totalorder %s88, %s91
      %p100 = scmp.eq.s32.totalorder %s22, 1
      %p101 = por %p99, %p100
      %p102 = scmp.ne.s32.totalorder %s91, %s92
      %p103 = scmp.eq.s32.totalorder %s22, 0
      %p104 = por %p102, %p103
      %p105 = scmp.ne.s32.totalorder %s91, %s92
      %p106 = scmp.eq.s32.totalorder %s23, 1
      %p107 = por %p105, %p106
      %p109 = scmp.ne.s32.totalorder %s92, %s108
      %p110 = scmp.eq.s32.totalorder %s23, 0
      %p111 = por %p109, %p110
      %s112 = ssub.s32 %s24, %s36
      %s113 = ssub.s32 %s25, %s32
      %s114 = sor.u32 %s112, %s113
      %p115 = scmp.eq.s32.totalorder %s114, 0
      %s117 = sadd.s32 %s116, 1
      %s118 = scalar_select %p115, %s116, %s117
      %p121 = pneg %p115
      %p122 = scmp.eq.s32.totalorder %s17, 1
      %p123 = por %p121, %p122
      %p124 = scmp.ne.s32.totalorder %s116, %s119
      %p125 = scmp.eq.s32.totalorder %s17, 0
      %p126 = por %p124, %p125
      %p127 = scmp.ne.s32.totalorder %s116, %s119
      %p128 = scmp.eq.s32.totalorder %s22, 1
      %p129 = por %p127, %p128
      %p130 = scmp.ne.s32.totalorder %s119, %s120
      %p131 = scmp.eq.s32.totalorder %s22, 0
      %p132 = por %p130, %p131
      %p133 = scmp.ne.s32.totalorder %s119, %s120
      %p134 = scmp.eq.s32.totalorder %s23, 1
      %p135 = por %p133, %p134
      %p137 = scmp.ne.s32.totalorder %s120, %s136
      %p138 = scmp.eq.s32.totalorder %s23, 0
      %p139 = por %p137, %p138
      %p140 = scmp.le.s32.totalorder 1, %s17
      %p141 = scmp.lt.s32.totalorder %s17, 3
      %p142 = pnand %p140, %p141
      %p143 = pneg %p142
      // Predicated region
      $region9: #{tpu_custom_call.1} parent=5 // pred_check
        _
      $region10: #{tpu_custom_call.1} parent=5 // pred_check_branch
        %145 = sbr.rel (%p142) target = $region12
      $region11: #{tpu_custom_call.1} parent=5 // pred_region
        %s146 = ssub.s32 %s17, 1
        // Predicated region
        $region13: #{tpu_custom_call.1} parent=11 // pred_check
          %p147 = pneg %p50
        $region14: #{tpu_custom_call.1} parent=11 // pred_check_branch
          %149 = sbr.rel (%p147) target = $region16
        $region15: #{tpu_custom_call.1} parent=11 // pred_region
          %s151 = ssub.s32 64, 64
          %152 = vsyncadd [#allocation3], %s151
          %s154 = sshll.u32 [#allocation2], 4
          %s155 = int_to_ptr.vmem [resolvable:$true] %s154
          %157 = dma.hbm_to_vmem [thread:$0]  %s0, 64, %s155, [#allocation3]
        $region16: #{tpu_custom_call.1} parent=11 // pred_fallthru
          _
      $region12: #{tpu_custom_call.1} parent=5 // pred_fallthru
        _
      %p158 = scmp.lt.s32.totalorder %s17, 2
      // Predicated region
      $region17: #{tpu_custom_call.1} parent=5 // pred_check
        %p159 = pneg %p158
      $region18: #{tpu_custom_call.1} parent=5 // pred_check_branch
        %161 = sbr.rel (%p159) target = $region20
      $region19: #{tpu_custom_call.1} parent=5 // pred_region
        // Predicated region
        $region21: #{tpu_custom_call.1} parent=19 // pred_check
          %p162 = pneg %p72
        $region22: #{tpu_custom_call.1} parent=19 // pred_check_branch
          %164 = sbr.rel (%p162) target = $region24
        $region23: #{tpu_custom_call.1} parent=19 // pred_region
          %s165 = sand.u32 %s62, 1
          %s166 = scalar_lea.sflag [#allocation6], %s165
          %s167 = sand.u32 %s62, 1
          %s168 = smul.addr %s167, 8
          %s169 = scalar_lea.vmem [#allocation5], %s168
          %s171 = ssub.s32 128, 128
          %172 = vsyncadd %s166, %s171
          %s173 = sadd.s32 %s25, %s24
          %s174 = smul.addr %s173, 128
          %s175 = scalar_lea.hbm %s1, %s174
          %s177 = sshll.u32 %s169, 4
          %s178 = int_to_ptr.vmem [resolvable:$true] %s177
          %180 = dma.hbm_to_vmem [thread:$0]  %s175, 128, %s178, %s166
        $region24: #{tpu_custom_call.1} parent=19 // pred_fallthru
          _
      $region20: #{tpu_custom_call.1} parent=5 // pred_fallthru
        _
      %p181 = scmp.le.s32.totalorder 1, %s17
      %p182 = scmp.lt.s32.totalorder %s17, 3
      %p183 = pnand %p181, %p182
      %p184 = pneg %p183
      // Predicated region
      $region25: #{tpu_custom_call.1} parent=5 // pred_check
        _
      $region26: #{tpu_custom_call.1} parent=5 // pred_check_branch
        %186 = sbr.rel (%p183) target = $region28
      $region27: #{tpu_custom_call.1} parent=5 // pred_region
        %s187 = ssub.s32 %s17, 1
        // Predicated region
        $region29: #{tpu_custom_call.1} parent=27 // pred_check
          %p188 = pneg %p50
        $region30: #{tpu_custom_call.1} parent=27 // pred_check_branch
          %190 = sbr.rel (%p188) target = $region32
        $region31: #{tpu_custom_call.1} parent=27 // pred_region
          %191 = dma.done [#allocation3], 64
        $region32: #{tpu_custom_call.1} parent=27 // pred_fallthru
          _
        %s192 = sand.u32 %s65, 1
        %s193 = scalar_lea.sflag [#allocation6], %s192
        %s194 = sand.u32 %s65, 1
        %s195 = smul.addr %s194, 8
        %s196 = scalar_lea.vmem [#allocation5], %s195
        // Predicated region
        $region33: #{tpu_custom_call.1} parent=27 // pred_check
          %p197 = pneg %p78
        $region34: #{tpu_custom_call.1} parent=27 // pred_check_branch
          %199 = sbr.rel (%p197) target = $region36
        $region35: #{tpu_custom_call.1} parent=27 // pred_region
          %200 = dma.done %s193, 128
        $region36: #{tpu_custom_call.1} parent=27 // pred_fallthru
          _
        %p201 = pneg %p50
        %p202 = pneg %p47
        %s203 = sand.u32 %s65, 1
        %s204 = scalar_lea.sflag [#allocation6], %s203
        %s205 = sand.u32 %s65, 1
        %s206 = smul.addr %s205, 8
        %s207 = scalar_lea.vmem [#allocation5], %s206
        %p208 = pneg %p78
        %p209 = pneg %p75
        %p210 = pneg %p104
        %p211 = pneg %p101
        %s212 = sand.u32 %s91, 1
        %s213 = scalar_lea.sflag [#allocation4], %s212
        %s214 = sand.u32 %s91, 1
        %s215 = smul.addr %s214, 4
        %s216 = scalar_lea.vmem [#allocation7], %s215
        %p217 = pneg %p132
        %p218 = pneg %p129
        %p219 = scmp.lt.s32.totalorder %s26, 1
        %s220 = scalar_select %p219, %s26, 1
        %p221 = scmp.lt.s32.totalorder %s27, 0
        %s222 = scalar_select %p221, %s27, 0
        %s223 = sadd.s32 %s222, %s220
        %s224 = smul.addr %s223, 8
        %s225 = scalar_lea.vmem %s3, %s224
        %p226 = scmp.lt.s32.totalorder %s26, 1
        %s227 = scalar_select %p226, %s26, 1
        %p228 = scmp.lt.s32.totalorder %s27, 0
        %s229 = scalar_select %p228, %s27, 0
        %s230 = sadd.s32 %s229, %s227
        %s231 = smul.addr %s230, 8
        %s232 = scalar_lea.vmem %s3, %s231
        %p233 = scmp.eq.s32.totalorder %s27, 0
        // Predicated region
        $region37: #{tpu_custom_call.1} parent=27 // pred_check
          %p234 = pneg %p233
        $region38: #{tpu_custom_call.1} parent=27 // pred_check_branch
          %236 = sbr.rel (%p234) target = $region40
        $region39: #{tpu_custom_call.1} parent=27 // pred_region
          %vm237 = vcmask 257024
          %238 = vst.msk [vmem:[%s216] sm:$0xf] %vm237, 0.0
        $region40: #{tpu_custom_call.1} parent=27 // pred_fallthru
          _
        %v239 = vld [vmem:[%s196] sm:$0xff]
        %v240 = vld [vmem:[#allocation2] sm:$0xf]
        %vm241 = vcmask 261120
        %v243 = vsel %vm241, %v240, 0
        %v246 = vsel %vm241, %v239, 0
        %248 = vmatprep.subr.mxu0 0.0
        %v249 = vand.u32 %v246, 4294901760
        %250 = vmatpush1.xpose.msra.mxu0 %v249
        %251 = vmatprep.subr.mxu0 0.0
        %252 = vmatpush1.xpose.msra.mxu0 0.0
        %253 = vmatprep.subr.mxu0 0.0
        %254 = vmatpush1.xpose.msra.mxu0 0.0
        %255 = vmatprep.subr.mxu0 0.0
        %256 = vmatpush1.xpose.msra.mxu0 0.0
        %257 = vmatprep.subr.mxu0 0.0
        %258 = vmatpush1.xpose.msra.mxu0 0.0
        %259 = vmatprep.subr.mxu0 0.0
        %260 = vmatpush1.xpose.msra.mxu0 0.0
        %261 = vmatprep.subr.mxu0 0.0
        %262 = vmatpush1.xpose.msra.mxu0 0.0
        %263 = vmatprep.subr.mxu0 0.0
        %264 = vmatpush1.xpose.msra.mxu0 0.0
        %265 = vmatprep.subr.mxu0 0.0
        %266 = vmatpush1.xpose.msra.mxu0 0.0
        %267 = vmatprep.subr.mxu0 0.0
        %268 = vmatpush1.xpose.msra.mxu0 0.0
        %269 = vmatprep.subr.mxu0 0.0
        %270 = vmatpush1.xpose.msra.mxu0 0.0
        %271 = vmatprep.subr.mxu0 0.0
        %272 = vmatpush1.xpose.msra.mxu0 0.0
        %273 = vmatprep.subr.mxu0 0.0
        %274 = vmatpush1.xpose.msra.mxu0 0.0
        %275 = vmatprep.subr.mxu0 0.0
        %276 = vmatpush1.xpose.msra.mxu0 0.0
        %277 = vmatprep.subr.mxu0 0.0
        %278 = vmatpush1.xpose.msra.mxu0 0.0
        %279 = vmatprep.subr.mxu0 0.0
        %280 = vmatpush1.xpose.msra.mxu0 0.0
        %281 = vmatprep.subr.mxu0 0.0
        %282 = vmatpush1.xpose.msra.mxu0 0.0
        %283 = vmatprep.subr.mxu0 0.0
        %284 = vmatpush1.xpose.msra.mxu0 0.0
        %285 = vmatprep.subr.mxu0 0.0
        %286 = vmatpush1.xpose.msra.mxu0 0.0
        %287 = vmatprep.subr.mxu0 0.0
        %288 = vmatpush1.xpose.msra.mxu0 0.0
        %289 = vmatprep.subr.mxu0 0.0
        %290 = vmatpush1.xpose.msra.mxu0 0.0
        %291 = vmatprep.subr.mxu0 0.0
        %292 = vmatpush1.xpose.msra.mxu0 0.0
        %293 = vmatprep.subr.mxu0 0.0
        %294 = vmatpush1.xpose.msra.mxu0 0.0
        %295 = vmatprep.subr.mxu0 0.0
        %296 = vmatpush1.xpose.msra.mxu0 0.0
        %297 = vmatprep.subr.mxu0 0.0
        %298 = vmatpush1.xpose.msra.mxu0 0.0
        %299 = vmatprep.subr.mxu0 0.0
        %300 = vmatpush1.xpose.msra.mxu0 0.0
        %301 = vmatprep.subr.mxu0 0.0
        %302 = vmatpush1.xpose.msra.mxu0 0.0
        %303 = vmatprep.subr.mxu0 0.0
        %304 = vmatpush1.xpose.msra.mxu0 0.0
        %305 = vmatprep.subr.mxu0 0.0
        %306 = vmatpush1.xpose.msra.mxu0 0.0
        %307 = vmatprep.subr.mxu0 0.0
        %308 = vmatpush1.xpose.msra.mxu0 0.0
        %309 = vmatprep.subr.mxu0 0.0
        %310 = vmatpush1.xpose.msra.mxu0 0.0
        %311 = vmatprep.subr.mxu0 0.0
        %312 = vmatpush1.xpose.msra.mxu0 0.0
        %313 = vmatprep.mubr.f32.mxu0 0.0
        %v314 = vand.u32 %v243, 4294901760
        %v315 = vsub.f32 %v243, %v314
        %v316 = vand.u32 %v315, 4294901760
        %v317 = vsub.f32 %v315, %v316
        %v318 = vand.u32 %v317, 4294901760
        %319 = vmatmul.mubr.f32.gmra.mrb[0].mxu0 %v318
        %v320 = vpop.f32.mrb[0].mxu0
        %v321 = vadd.f32 0.0, %v320
        %v322 = vpop.f32.mrb[0].mxu0
        %323 = vdwg.mxu0
        %324 = vmatprep.subr.mxu0 0.0
        %v325 = vand.u32 %v246, 4294901760
        %v326 = vsub.f32 %v246, %v325
        %v327 = vand.u32 %v326, 4294901760
        %v328 = vsub.f32 %v326, %v327
        %v329 = vand.u32 %v328, 4294901760
        %330 = vmatpush1.xpose.msra.mxu0 %v329
        %331 = vmatprep.subr.mxu0 0.0
        %332 = vmatpush1.xpose.msra.mxu0 0.0
        %333 = vmatprep.subr.mxu0 0.0
        %334 = vmatpush1.xpose.msra.mxu0 0.0
        %335 = vmatprep.subr.mxu0 0.0
        %336 = vmatpush1.xpose.msra.mxu0 0.0
        %337 = vmatprep.subr.mxu0 0.0
        %338 = vmatpush1.xpose.msra.mxu0 0.0
        %339 = vmatprep.subr.mxu0 0.0
        %340 = vmatpush1.xpose.msra.mxu0 0.0
        %341 = vmatprep.subr.mxu0 0.0
        %342 = vmatpush1.xpose.msra.mxu0 0.0
        %343 = vmatprep.subr.mxu0 0.0
        %344 = vmatpush1.xpose.msra.mxu0 0.0
        %345 = vmatprep.subr.mxu0 0.0
        %346 = vmatpush1.xpose.msra.mxu0 0.0
        %347 = vmatprep.subr.mxu0 0.0
        %348 = vmatpush1.xpose.msra.mxu0 0.0
        %349 = vmatprep.subr.mxu0 0.0
        %350 = vmatpush1.xpose.msra.mxu0 0.0
        %351 = vmatprep.subr.mxu0 0.0
        %352 = vmatpush1.xpose.msra.mxu0 0.0
        %353 = vmatprep.subr.mxu0 0.0
        %354 = vmatpush1.xpose.msra.mxu0 0.0
        %355 = vmatprep.subr.mxu0 0.0
        %356 = vmatpush1.xpose.msra.mxu0 0.0
        %357 = vmatprep.subr.mxu0 0.0
        %358 = vmatpush1.xpose.msra.mxu0 0.0
        %359 = vmatprep.subr.mxu0 0.0
        %360 = vmatpush1.xpose.msra.mxu0 0.0
        %361 = vmatprep.subr.mxu0 0.0
        %362 = vmatpush1.xpose.msra.mxu0 0.0
        %363 = vmatprep.subr.mxu0 0.0
        %364 = vmatpush1.xpose.msra.mxu0 0.0
        %365 = vmatprep.subr.mxu0 0.0
        %366 = vmatpush1.xpose.msra.mxu0 0.0
        %367 = vmatprep.subr.mxu0 0.0
        %368 = vmatpush1.xpose.msra.mxu0 0.0
        %369 = vmatprep.subr.mxu0 0.0
        %370 = vmatpush1.xpose.msra.mxu0 0.0
        %371 = vmatprep.subr.mxu0 0.0
        %372 = vmatpush1.xpose.msra.mxu0 0.0
        %373 = vmatprep.subr.mxu0 0.0
        %374 = vmatpush1.xpose.msra.mxu0 0.0
        %375 = vmatprep.subr.mxu0 0.0
        %376 = vmatpush1.xpose.msra.mxu0 0.0
        %377 = vmatprep.subr.mxu0 0.0
        %378 = vmatpush1.xpose.msra.mxu0 0.0
        %379 = vmatprep.subr.mxu0 0.0
        %380 = vmatpush1.xpose.msra.mxu0 0.0
        %381 = vmatprep.subr.mxu0 0.0
        %382 = vmatpush1.xpose.msra.mxu0 0.0
        %383 = vmatprep.subr.mxu0 0.0
        %384 = vmatpush1.xpose.msra.mxu0 0.0
        %385 = vmatprep.subr.mxu0 0.0
        %386 = vmatpush1.xpose.msra.mxu0 0.0
        %387 = vmatprep.subr.mxu0 0.0
        %388 = vmatpush1.xpose.msra.mxu0 0.0
        %389 = vmatprep.subr.mxu0 0.0
        %390 = vmatpush1.xpose.msra.mxu0 0.0
        %391 = vmatprep.subr.mxu0 0.0
        %392 = vmatpush1.xpose.msra.mxu0 0.0
        %393 = vmatprep.mubr.f32.mxu0 0.0
        %v394 = vand.u32 %v243, 4294901760
        %395 = vmatmul.mubr.f32.gmra.mrb[0].mxu0 %v394
        %v396 = vpop.f32.mrb[0].mxu0
        %v397 = vadd.f32 %v321, %v396
        %v398 = vpop.f32.mrb[0].mxu0
        %399 = vdwg.mxu0
        %400 = vmatprep.subr.mxu0 0.0
        %v401 = vand.u32 %v246, 4294901760
        %v402 = vsub.f32 %v246, %v401
        %403 = vmatpush1.xpose.msra.mxu0 %v402
        %404 = vmatprep.subr.mxu0 0.0
        %405 = vmatpush1.xpose.msra.mxu0 0.0
        %406 = vmatprep.subr.mxu0 0.0
        %407 = vmatpush1.xpose.msra.mxu0 0.0
        %408 = vmatprep.subr.mxu0 0.0
        %409 = vmatpush1.xpose.msra.mxu0 0.0
        %410 = vmatprep.subr.mxu0 0.0
        %411 = vmatpush1.xpose.msra.mxu0 0.0
        %412 = vmatprep.subr.mxu0 0.0
        %413 = vmatpush1.xpose.msra.mxu0 0.0
        %414 = vmatprep.subr.mxu0 0.0
        %415 = vmatpush1.xpose.msra.mxu0 0.0
        %416 = vmatprep.subr.mxu0 0.0
        %417 = vmatpush1.xpose.msra.mxu0 0.0
        %418 = vmatprep.subr.mxu0 0.0
        %419 = vmatpush1.xpose.msra.mxu0 0.0
        %420 = vmatprep.subr.mxu0 0.0
        %421 = vmatpush1.xpose.msra.mxu0 0.0
        %422 = vmatprep.subr.mxu0 0.0
        %423 = vmatpush1.xpose.msra.mxu0 0.0
        %424 = vmatprep.subr.mxu0 0.0
        %425 = vmatpush1.xpose.msra.mxu0 0.0
        %426 = vmatprep.subr.mxu0 0.0
        %427 = vmatpush1.xpose.msra.mxu0 0.0
        %428 = vmatprep.subr.mxu0 0.0
        %429 = vmatpush1.xpose.msra.mxu0 0.0
        %430 = vmatprep.subr.mxu0 0.0
        %431 = vmatpush1.xpose.msra.mxu0 0.0
        %432 = vmatprep.subr.mxu0 0.0
        %433 = vmatpush1.xpose.msra.mxu0 0.0
        %434 = vmatprep.subr.mxu0 0.0
        %435 = vmatpush1.xpose.msra.mxu0 0.0
        %436 = vmatprep.subr.mxu0 0.0
        %437 = vmatpush1.xpose.msra.mxu0 0.0
        %438 = vmatprep.subr.mxu0 0.0
        %439 = vmatpush1.xpose.msra.mxu0 0.0
        %440 = vmatprep.subr.mxu0 0.0
        %441 = vmatpush1.xpose.msra.mxu0 0.0
        %442 = vmatprep.subr.mxu0 0.0
        %443 = vmatpush1.xpose.msra.mxu0 0.0
        %444 = vmatprep.subr.mxu0 0.0
        %445 = vmatpush1.xpose.msra.mxu0 0.0
        %446 = vmatprep.subr.mxu0 0.0
        %447 = vmatpush1.xpose.msra.mxu0 0.0
        %448 = vmatprep.subr.mxu0 0.0
        %449 = vmatpush1.xpose.msra.mxu0 0.0
        %450 = vmatprep.subr.mxu0 0.0
        %451 = vmatpush1.xpose.msra.mxu0 0.0
        %452 = vmatprep.subr.mxu0 0.0
        %453 = vmatpush1.xpose.msra.mxu0 0.0
        %454 = vmatprep.subr.mxu0 0.0
        %455 = vmatpush1.xpose.msra.mxu0 0.0
        %456 = vmatprep.subr.mxu0 0.0
        %457 = vmatpush1.xpose.msra.mxu0 0.0
        %458 = vmatprep.subr.mxu0 0.0
        %459 = vmatpush1.xpose.msra.mxu0 0.0
        %460 = vmatprep.subr.mxu0 0.0
        %461 = vmatpush1.xpose.msra.mxu0 0.0
        %462 = vmatprep.subr.mxu0 0.0
        %463 = vmatpush1.xpose.msra.mxu0 0.0
        %464 = vmatprep.subr.mxu0 0.0
        %465 = vmatpush1.xpose.msra.mxu0 0.0
        %466 = vmatprep.mubr.f32.mxu0 0.0
        %v467 = vand.u32 %v243, 4294901760
        %v468 = vsub.f32 %v243, %v467
        %469 = vmatmul.mubr.f32.gmra.mrb[0].mxu0 %v468
        %v470 = vpop.f32.mrb[0].mxu0
        %v471 = vadd.f32 %v397, %v470
        %v472 = vpop.f32.mrb[0].mxu0
        %473 = vdwg.mxu0
        %474 = vmatprep.subr.mxu0 0.0
        %v475 = vand.u32 %v246, 4294901760
        %476 = vmatpush1.xpose.msra.mxu0 %v475
        %477 = vmatprep.subr.mxu0 0.0
        %478 = vmatpush1.xpose.msra.mxu0 0.0
        %479 = vmatprep.subr.mxu0 0.0
        %480 = vmatpush1.xpose.msra.mxu0 0.0
        %481 = vmatprep.subr.mxu0 0.0
        %482 = vmatpush1.xpose.msra.mxu0 0.0
        %483 = vmatprep.subr.mxu0 0.0
        %484 = vmatpush1.xpose.msra.mxu0 0.0
        %485 = vmatprep.subr.mxu0 0.0
        %486 = vmatpush1.xpose.msra.mxu0 0.0
        %487 = vmatprep.subr.mxu0 0.0
        %488 = vmatpush1.xpose.msra.mxu0 0.0
        %489 = vmatprep.subr.mxu0 0.0
        %490 = vmatpush1.xpose.msra.mxu0 0.0
        %491 = vmatprep.subr.mxu0 0.0
        %492 = vmatpush1.xpose.msra.mxu0 0.0
        %493 = vmatprep.subr.mxu0 0.0
        %494 = vmatpush1.xpose.msra.mxu0 0.0
        %495 = vmatprep.subr.mxu0 0.0
        %496 = vmatpush1.xpose.msra.mxu0 0.0
        %497 = vmatprep.subr.mxu0 0.0
        %498 = vmatpush1.xpose.msra.mxu0 0.0
        %499 = vmatprep.subr.mxu0 0.0
        %500 = vmatpush1.xpose.msra.mxu0 0.0
        %501 = vmatprep.subr.mxu0 0.0
        %502 = vmatpush1.xpose.msra.mxu0 0.0
        %503 = vmatprep.subr.mxu0 0.0
        %504 = vmatpush1.xpose.msra.mxu0 0.0
        %505 = vmatprep.subr.mxu0 0.0
        %506 = vmatpush1.xpose.msra.mxu0 0.0
        %507 = vmatprep.subr.mxu0 0.0
        %508 = vmatpush1.xpose.msra.mxu0 0.0
        %509 = vmatprep.subr.mxu0 0.0
        %510 = vmatpush1.xpose.msra.mxu0 0.0
        %511 = vmatprep.subr.mxu0 0.0
        %512 = vmatpush1.xpose.msra.mxu0 0.0
        %513 = vmatprep.subr.mxu0 0.0
        %514 = vmatpush1.xpose.msra.mxu0 0.0
        %515 = vmatprep.subr.mxu0 0.0
        %516 = vmatpush1.xpose.msra.mxu0 0.0
        %517 = vmatprep.subr.mxu0 0.0
        %518 = vmatpush1.xpose.msra.mxu0 0.0
        %519 = vmatprep.subr.mxu0 0.0
        %520 = vmatpush1.xpose.msra.mxu0 0.0
        %521 = vmatprep.subr.mxu0 0.0
        %522 = vmatpush1.xpose.msra.mxu0 0.0
        %523 = vmatprep.subr.mxu0 0.0
        %524 = vmatpush1.xpose.msra.mxu0 0.0
        %525 = vmatprep.subr.mxu0 0.0
        %526 = vmatpush1.xpose.msra.mxu0 0.0
        %527 = vmatprep.subr.mxu0 0.0
        %528 = vmatpush1.xpose.msra.mxu0 0.0
        %529 = vmatprep.subr.mxu0 0.0
        %530 = vmatpush1.xpose.msra.mxu0 0.0
        %531 = vmatprep.subr.mxu0 0.0
        %532 = vmatpush1.xpose.msra.mxu0 0.0
        %533 = vmatprep.subr.mxu0 0.0
        %534 = vmatpush1.xpose.msra.mxu0 0.0
        %535 = vmatprep.subr.mxu0 0.0
        %536 = vmatpush1.xpose.msra.mxu0 0.0
        %537 = vmatprep.subr.mxu0 0.0
        %538 = vmatpush1.xpose.msra.mxu0 0.0
        %539 = vmatprep.mubr.f32.mxu0 0.0
        %v540 = vand.u32 %v243, 4294901760
        %v541 = vsub.f32 %v243, %v540
        %v542 = vand.u32 %v541, 4294901760
        %543 = vmatmul.mubr.f32.gmra.mrb[0].mxu0 %v542
        %v544 = vpop.f32.mrb[0].mxu0
        %v545 = vadd.f32 %v471, %v544
        %v546 = vpop.f32.mrb[0].mxu0
        %547 = vdwg.mxu0
        %548 = vmatprep.subr.mxu0 0.0
        %v549 = vand.u32 %v246, 4294901760
        %v550 = vsub.f32 %v246, %v549
        %v551 = vand.u32 %v550, 4294901760
        %552 = vmatpush1.xpose.msra.mxu0 %v551
        %553 = vmatprep.subr.mxu0 0.0
        %554 = vmatpush1.xpose.msra.mxu0 0.0
        %555 = vmatprep.subr.mxu0 0.0
        %556 = vmatpush1.xpose.msra.mxu0 0.0
        %557 = vmatprep.subr.mxu0 0.0
        %558 = vmatpush1.xpose.msra.mxu0 0.0
        %559 = vmatprep.subr.mxu0 0.0
        %560 = vmatpush1.xpose.msra.mxu0 0.0
        %561 = vmatprep.subr.mxu0 0.0
        %562 = vmatpush1.xpose.msra.mxu0 0.0
        %563 = vmatprep.subr.mxu0 0.0
        %564 = vmatpush1.xpose.msra.mxu0 0.0
        %565 = vmatprep.subr.mxu0 0.0
        %566 = vmatpush1.xpose.msra.mxu0 0.0
        %567 = vmatprep.subr.mxu0 0.0
        %568 = vmatpush1.xpose.msra.mxu0 0.0
        %569 = vmatprep.subr.mxu0 0.0
        %570 = vmatpush1.xpose.msra.mxu0 0.0
        %571 = vmatprep.subr.mxu0 0.0
        %572 = vmatpush1.xpose.msra.mxu0 0.0
        %573 = vmatprep.subr.mxu0 0.0
        %574 = vmatpush1.xpose.msra.mxu0 0.0
        %575 = vmatprep.subr.mxu0 0.0
        %576 = vmatpush1.xpose.msra.mxu0 0.0
        %577 = vmatprep.subr.mxu0 0.0
        %578 = vmatpush1.xpose.msra.mxu0 0.0
        %579 = vmatprep.subr.mxu0 0.0
        %580 = vmatpush1.xpose.msra.mxu0 0.0
        %581 = vmatprep.subr.mxu0 0.0
        %582 = vmatpush1.xpose.msra.mxu0 0.0
        %583 = vmatprep.subr.mxu0 0.0
        %584 = vmatpush1.xpose.msra.mxu0 0.0
        %585 = vmatprep.subr.mxu0 0.0
        %586 = vmatpush1.xpose.msra.mxu0 0.0
        %587 = vmatprep.subr.mxu0 0.0
        %588 = vmatpush1.xpose.msra.mxu0 0.0
        %589 = vmatprep.subr.mxu0 0.0
        %590 = vmatpush1.xpose.msra.mxu0 0.0
        %591 = vmatprep.subr.mxu0 0.0
        %592 = vmatpush1.xpose.msra.mxu0 0.0
        %593 = vmatprep.subr.mxu0 0.0
        %594 = vmatpush1.xpose.msra.mxu0 0.0
        %595 = vmatprep.subr.mxu0 0.0
        %596 = vmatpush1.xpose.msra.mxu0 0.0
        %597 = vmatprep.subr.mxu0 0.0
        %598 = vmatpush1.xpose.msra.mxu0 0.0
        %599 = vmatprep.subr.mxu0 0.0
        %600 = vmatpush1.xpose.msra.mxu0 0.0
        %601 = vmatprep.subr.mxu0 0.0
        %602 = vmatpush1.xpose.msra.mxu0 0.0
        %603 = vmatprep.subr.mxu0 0.0
        %604 = vmatpush1.xpose.msra.mxu0 0.0
        %605 = vmatprep.subr.mxu0 0.0
        %606 = vmatpush1.xpose.msra.mxu0 0.0
        %607 = vmatprep.subr.mxu0 0.0
        %608 = vmatpush1.xpose.msra.mxu0 0.0
        %609 = vmatprep.subr.mxu0 0.0
        %610 = vmatpush1.xpose.msra.mxu0 0.0
        %611 = vmatprep.subr.mxu0 0.0
        %612 = vmatpush1.xpose.msra.mxu0 0.0
        %613 = vmatprep.subr.mxu0 0.0
        %614 = vmatpush1.xpose.msra.mxu0 0.0
        %615 = vmatprep.mubr.f32.mxu0 0.0
        %v616 = vand.u32 %v243, 4294901760
        %617 = vmatmul.mubr.f32.gmra.mrb[0].mxu0 %v616
        %v618 = vpop.f32.mrb[0].mxu0
        %v619 = vadd.f32 %v545, %v618
        %v620 = vpop.f32.mrb[0].mxu0
        %621 = vdwg.mxu0
        %622 = vmatprep.subr.mxu0 0.0
        %v623 = vand.u32 %v246, 4294901760
        %624 = vmatpush1.xpose.msra.mxu0 %v623
        %625 = vmatprep.subr.mxu0 0.0
        %626 = vmatpush1.xpose.msra.mxu0 0.0
        %627 = vmatprep.subr.mxu0 0.0
        %628 = vmatpush1.xpose.msra.mxu0 0.0
        %629 = vmatprep.subr.mxu0 0.0
        %630 = vmatpush1.xpose.msra.mxu0 0.0
        %631 = vmatprep.subr.mxu0 0.0
        %632 = vmatpush1.xpose.msra.mxu0 0.0
        %633 = vmatprep.subr.mxu0 0.0
        %634 = vmatpush1.xpose.msra.mxu0 0.0
        %635 = vmatprep.subr.mxu0 0.0
        %636 = vmatpush1.xpose.msra.mxu0 0.0
        %637 = vmatprep.subr.mxu0 0.0
        %638 = vmatpush1.xpose.msra.mxu0 0.0
        %639 = vmatprep.subr.mxu0 0.0
        %640 = vmatpush1.xpose.msra.mxu0 0.0
        %641 = vmatprep.subr.mxu0 0.0
        %642 = vmatpush1.xpose.msra.mxu0 0.0
        %643 = vmatprep.subr.mxu0 0.0
        %644 = vmatpush1.xpose.msra.mxu0 0.0
        %645 = vmatprep.subr.mxu0 0.0
        %646 = vmatpush1.xpose.msra.mxu0 0.0
        %647 = vmatprep.subr.mxu0 0.0
        %648 = vmatpush1.xpose.msra.mxu0 0.0
        %649 = vmatprep.subr.mxu0 0.0
        %650 = vmatpush1.xpose.msra.mxu0 0.0
        %651 = vmatprep.subr.mxu0 0.0
        %652 = vmatpush1.xpose.msra.mxu0 0.0
        %653 = vmatprep.subr.mxu0 0.0
        %654 = vmatpush1.xpose.msra.mxu0 0.0
        %655 = vmatprep.subr.mxu0 0.0
        %656 = vmatpush1.xpose.msra.mxu0 0.0
        %657 = vmatprep.subr.mxu0 0.0
        %658 = vmatpush1.xpose.msra.mxu0 0.0
        %659 = vmatprep.subr.mxu0 0.0
        %660 = vmatpush1.xpose.msra.mxu0 0.0
        %661 = vmatprep.subr.mxu0 0.0
        %662 = vmatpush1.xpose.msra.mxu0 0.0
        %663 = vmatprep.subr.mxu0 0.0
        %664 = vmatpush1.xpose.msra.mxu0 0.0
        %665 = vmatprep.subr.mxu0 0.0
        %666 = vmatpush1.xpose.msra.mxu0 0.0
        %667 = vmatprep.subr.mxu0 0.0
        %668 = vmatpush1.xpose.msra.mxu0 0.0
        %669 = vmatprep.subr.mxu0 0.0
        %670 = vmatpush1.xpose.msra.mxu0 0.0
        %671 = vmatprep.subr.mxu0 0.0
        %672 = vmatpush1.xpose.msra.mxu0 0.0
        %673 = vmatprep.subr.mxu0 0.0
        %674 = vmatpush1.xpose.msra.mxu0 0.0
        %675 = vmatprep.subr.mxu0 0.0
        %676 = vmatpush1.xpose.msra.mxu0 0.0
        %677 = vmatprep.subr.mxu0 0.0
        %678 = vmatpush1.xpose.msra.mxu0 0.0
        %679 = vmatprep.subr.mxu0 0.0
        %680 = vmatpush1.xpose.msra.mxu0 0.0
        %681 = vmatprep.subr.mxu0 0.0
        %682 = vmatpush1.xpose.msra.mxu0 0.0
        %683 = vmatprep.subr.mxu0 0.0
        %684 = vmatpush1.xpose.msra.mxu0 0.0
        %685 = vmatprep.subr.mxu0 0.0
        %686 = vmatpush1.xpose.msra.mxu0 0.0
        %687 = vmatprep.mubr.f32.mxu0 0.0
        %v688 = vand.u32 %v243, 4294901760
        %689 = vmatmul.mubr.f32.gmra.mrb[0].mxu0 %v688
        %v690 = vpop.f32.mrb[0].mxu0
        %v691 = vadd.f32 %v619, %v690
        %v692 = vpop.f32.mrb[0].mxu0
        %693 = vdwg.mxu0
        %v694 = vmul.f32 %v691, %v691
        %vm695 = vcmask 60416
        %v696 = vsel %vm695, %v694, -inf
        %v697 = vrot.slane %v696, 4
        %v698 = vmax.f32 %v696, %v697
        %v699 = vrot.slane %v698, 2
        %v700 = vmax.f32 %v698, %v699
        %v701 = vrot.slane %v700, 1
        %v702 = vmax.f32 %v700, %v701
        %v703 = vsub.f32 %v694, %v702
        %v704 = vmul.f32 %v703, 1.442695
        %v705 = vpow.pop %v704
        %v706 = vsel %vm695, %v705, 0.0
        %v707 = vrot.slane %v706, 4
        %v708 = vadd.f32 %v706, %v707
        %v709 = vrot.slane %v708, 2
        %v710 = vadd.f32 %v708, %v709
        %v711 = vrot.slane %v710, 1
        %v712 = vadd.f32 %v710, %v711
        %v713 = vrcp.pop %v712
        %v714 = vmul.f32 %v712, %v713
        %v715 = vsub.f32 2.0, %v714
        %v716 = vmul.f32 %v713, %v715
        %v717 = vmul.f32 %v705, %v716
        %718 = vxpose.xlu0.b32.start [1/16] %v717, 128
        %719 = vxpose.xlu0.b32.cont [2/16] 0.0, 128
        %720 = vxpose.xlu0.b32.cont [3/16] 0.0, 128
        %721 = vxpose.xlu0.b32.cont [4/16] 0.0, 128
        %722 = vxpose.xlu0.b32.cont [5/16] 0.0, 128
        %723 = vxpose.xlu0.b32.cont [6/16] 0.0, 128
        %724 = vxpose.xlu0.b32.cont [7/16] 0.0, 128
        %725 = vxpose.xlu0.b32.cont [8/16] 0.0, 128
        %726 = vxpose.xlu0.b32.cont [9/16] 0.0, 128
        %727 = vxpose.xlu0.b32.cont [10/16] 0.0, 128
        %728 = vxpose.xlu0.b32.cont [11/16] 0.0, 128
        %729 = vxpose.xlu0.b32.cont [12/16] 0.0, 128
        %730 = vxpose.xlu0.b32.cont [13/16] 0.0, 128
        %731 = vxpose.xlu0.b32.cont [14/16] 0.0, 128
        %732 = vxpose.xlu0.b32.cont [15/16] 0.0, 128
        %733 = vxpose.xlu0.b32.end [16/16] 0.0, 128
        %v734 = vpop.trf.xlu0
        %v735 = vpop.trf.xlu0
        %v736 = vpop.trf.xlu0
        %v737 = vpop.trf.xlu0
        %v738 = vpop.trf.xlu0
        %v739 = vpop.trf.xlu0
        %v740 = vpop.trf.xlu0
        %v741 = vpop.trf.xlu0
        %v742 = vpop.trf.xlu0
        %v743 = vpop.trf.xlu0
        %v744 = vpop.trf.xlu0
        %v745 = vpop.trf.xlu0
        %v746 = vpop.trf.xlu0
        %v747 = vpop.trf.xlu0
        %v748 = vpop.trf.xlu0
        %v749 = vpop.trf.xlu0
        %vm750 = vcmask 31744
        %751 = vst.msk [vmem:[%s232] sm:$0xff] %vm750, %v734
        %v752 = vld [vmem:[%s216] sm:$0xf]
        %vm753 = vcmask 64512
        %v755 = vsel %vm753, %v717, 0
        %757 = vmatprep.subr.mxu0 0.0
        %v758 = vand.u32 %v239, 4294901760
        %759 = vmatpush1.msra.mxu0 %v758
        %760 = vmatprep.subr.mxu0 0.0
        %761 = vmatpush1.msra.mxu0 0.0
        %762 = vmatprep.subr.mxu0 0.0
        %763 = vmatpush1.msra.mxu0 0.0
        %764 = vmatprep.subr.mxu0 0.0
        %765 = vmatpush1.msra.mxu0 0.0
        %766 = vmatprep.subr.mxu0 0.0
        %767 = vmatpush1.msra.mxu0 0.0
        %768 = vmatprep.subr.mxu0 0.0
        %769 = vmatpush1.msra.mxu0 0.0
        %770 = vmatprep.subr.mxu0 0.0
        %771 = vmatpush1.msra.mxu0 0.0
        %772 = vmatprep.subr.mxu0 0.0
        %773 = vmatpush1.msra.mxu0 0.0
        %774 = vmatprep.subr.mxu0 0.0
        %775 = vmatpush1.msra.mxu0 0.0
        %776 = vmatprep.subr.mxu0 0.0
        %777 = vmatpush1.msra.mxu0 0.0
        %778 = vmatprep.subr.mxu0 0.0
        %779 = vmatpush1.msra.mxu0 0.0
        %780 = vmatprep.subr.mxu0 0.0
        %781 = vmatpush1.msra.mxu0 0.0
        %782 = vmatprep.subr.mxu0 0.0
        %783 = vmatpush1.msra.mxu0 0.0
        %784 = vmatprep.subr.mxu0 0.0
        %785 = vmatpush1.msra.mxu0 0.0
        %786 = vmatprep.subr.mxu0 0.0
        %787 = vmatpush1.msra.mxu0 0.0
        %788 = vmatprep.subr.mxu0 0.0
        %789 = vmatpush1.msra.mxu0 0.0
        %790 = vmatprep.subr.mxu0 0.0
        %791 = vmatpush1.msra.mxu0 0.0
        %792 = vmatprep.subr.mxu0 0.0
        %793 = vmatpush1.msra.mxu0 0.0
        %794 = vmatprep.subr.mxu0 0.0
        %795 = vmatpush1.msra.mxu0 0.0
        %796 = vmatprep.subr.mxu0 0.0
        %797 = vmatpush1.msra.mxu0 0.0
        %798 = vmatprep.subr.mxu0 0.0
        %799 = vmatpush1.msra.mxu0 0.0
        %800 = vmatprep.subr.mxu0 0.0
        %801 = vmatpush1.msra.mxu0 0.0
        %802 = vmatprep.subr.mxu0 0.0
        %803 = vmatpush1.msra.mxu0 0.0
        %804 = vmatprep.subr.mxu0 0.0
        %805 = vmatpush1.msra.mxu0 0.0
        %806 = vmatprep.subr.mxu0 0.0
        %807 = vmatpush1.msra.mxu0 0.0
        %808 = vmatprep.subr.mxu0 0.0
        %809 = vmatpush1.msra.mxu0 0.0
        %810 = vmatprep.subr.mxu0 0.0
        %811 = vmatpush1.msra.mxu0 0.0
        %812 = vmatprep.subr.mxu0 0.0
        %813 = vmatpush1.msra.mxu0 0.0
        %814 = vmatprep.subr.mxu0 0.0
        %815 = vmatpush1.msra.mxu0 0.0
        %816 = vmatprep.subr.mxu0 0.0
        %817 = vmatpush1.msra.mxu0 0.0
        %818 = vmatprep.subr.mxu0 0.0
        %819 = vmatpush1.msra.mxu0 0.0
        %820 = vmatprep.subr.mxu0 0.0
        %821 = vmatpush1.msra.mxu0 0.0
        %822 = vmatprep.mubr.f32.mxu0 0.0
        %v823 = vand.u32 %v755, 4294901760
        %v824 = vsub.f32 %v755, %v823
        %v825 = vand.u32 %v824, 4294901760
        %v826 = vsub.f32 %v824, %v825
        %v827 = vand.u32 %v826, 4294901760
        %828 = vmatmul.mubr.f32.gmra.mrb[0].mxu0 %v827
        %v829 = vpop.f32.mrb[0].mxu0
        %v830 = vadd.f32 0.0, %v829
        %v831 = vpop.f32.mrb[0].mxu0
        %832 = vdwg.mxu0
        %833 = vmatprep.subr.mxu0 0.0
        %v834 = vand.u32 %v239, 4294901760
        %v835 = vsub.f32 %v239, %v834
        %v836 = vand.u32 %v835, 4294901760
        %v837 = vsub.f32 %v835, %v836
        %v838 = vand.u32 %v837, 4294901760
        %839 = vmatpush1.msra.mxu0 %v838
        %840 = vmatprep.subr.mxu0 0.0
        %841 = vmatpush1.msra.mxu0 0.0
        %842 = vmatprep.subr.mxu0 0.0
        %843 = vmatpush1.msra.mxu0 0.0
        %844 = vmatprep.subr.mxu0 0.0
        %845 = vmatpush1.msra.mxu0 0.0
        %846 = vmatprep.subr.mxu0 0.0
        %847 = vmatpush1.msra.mxu0 0.0
        %848 = vmatprep.subr.mxu0 0.0
        %849 = vmatpush1.msra.mxu0 0.0
        %850 = vmatprep.subr.mxu0 0.0
        %851 = vmatpush1.msra.mxu0 0.0
        %852 = vmatprep.subr.mxu0 0.0
        %853 = vmatpush1.msra.mxu0 0.0
        %854 = vmatprep.subr.mxu0 0.0
        %855 = vmatpush1.msra.mxu0 0.0
        %856 = vmatprep.subr.mxu0 0.0
        %857 = vmatpush1.msra.mxu0 0.0
        %858 = vmatprep.subr.mxu0 0.0
        %859 = vmatpush1.msra.mxu0 0.0
        %860 = vmatprep.subr.mxu0 0.0
        %861 = vmatpush1.msra.mxu0 0.0
        %862 = vmatprep.subr.mxu0 0.0
        %863 = vmatpush1.msra.mxu0 0.0
        %864 = vmatprep.subr.mxu0 0.0
        %865 = vmatpush1.msra.mxu0 0.0
        %866 = vmatprep.subr.mxu0 0.0
        %867 = vmatpush1.msra.mxu0 0.0
        %868 = vmatprep.subr.mxu0 0.0
        %869 = vmatpush1.msra.mxu0 0.0
        %870 = vmatprep.subr.mxu0 0.0
        %871 = vmatpush1.msra.mxu0 0.0
        %872 = vmatprep.subr.mxu0 0.0
        %873 = vmatpush1.msra.mxu0 0.0
        %874 = vmatprep.subr.mxu0 0.0
        %875 = vmatpush1.msra.mxu0 0.0
        %876 = vmatprep.subr.mxu0 0.0
        %877 = vmatpush1.msra.mxu0 0.0
        %878 = vmatprep.subr.mxu0 0.0
        %879 = vmatpush1.msra.mxu0 0.0
        %880 = vmatprep.subr.mxu0 0.0
        %881 = vmatpush1.msra.mxu0 0.0
        %882 = vmatprep.subr.mxu0 0.0
        %883 = vmatpush1.msra.mxu0 0.0
        %884 = vmatprep.subr.mxu0 0.0
        %885 = vmatpush1.msra.mxu0 0.0
        %886 = vmatprep.subr.mxu0 0.0
        %887 = vmatpush1.msra.mxu0 0.0
        %888 = vmatprep.subr.mxu0 0.0
        %889 = vmatpush1.msra.mxu0 0.0
        %890 = vmatprep.subr.mxu0 0.0
        %891 = vmatpush1.msra.mxu0 0.0
        %892 = vmatprep.subr.mxu0 0.0
        %893 = vmatpush1.msra.mxu0 0.0
        %894 = vmatprep.subr.mxu0 0.0
        %895 = vmatpush1.msra.mxu0 0.0
        %896 = vmatprep.subr.mxu0 0.0
        %897 = vmatpush1.msra.mxu0 0.0
        %898 = vmatprep.subr.mxu0 0.0
        %899 = vmatpush1.msra.mxu0 0.0
        %900 = vmatprep.subr.mxu0 0.0
        %901 = vmatpush1.msra.mxu0 0.0
        %902 = vmatprep.mubr.f32.mxu0 0.0
        %v903 = vand.u32 %v755, 4294901760
        %904 = vmatmul.mubr.f32.gmra.mrb[0].mxu0 %v903
        %v905 = vpop.f32.mrb[0].mxu0
        %v906 = vadd.f32 %v830, %v905
        %v907 = vpop.f32.mrb[0].mxu0
        %908 = vdwg.mxu0
        %909 = vmatprep.subr.mxu0 0.0
        %v910 = vand.u32 %v239, 4294901760
        %v911 = vsub.f32 %v239, %v910
        %912 = vmatpush1.msra.mxu0 %v911
        %913 = vmatprep.subr.mxu0 0.0
        %914 = vmatpush1.msra.mxu0 0.0
        %915 = vmatprep.subr.mxu0 0.0
        %916 = vmatpush1.msra.mxu0 0.0
        %917 = vmatprep.subr.mxu0 0.0
        %918 = vmatpush1.msra.mxu0 0.0
        %919 = vmatprep.subr.mxu0 0.0
        %920 = vmatpush1.msra.mxu0 0.0
        %921 = vmatprep.subr.mxu0 0.0
        %922 = vmatpush1.msra.mxu0 0.0
        %923 = vmatprep.subr.mxu0 0.0
        %924 = vmatpush1.msra.mxu0 0.0
        %925 = vmatprep.subr.mxu0 0.0
        %926 = vmatpush1.msra.mxu0 0.0
        %927 = vmatprep.subr.mxu0 0.0
        %928 = vmatpush1.msra.mxu0 0.0
        %929 = vmatprep.subr.mxu0 0.0
        %930 = vmatpush1.msra.mxu0 0.0
        %931 = vmatprep.subr.mxu0 0.0
        %932 = vmatpush1.msra.mxu0 0.0
        %933 = vmatprep.subr.mxu0 0.0
        %934 = vmatpush1.msra.mxu0 0.0
        %935 = vmatprep.subr.mxu0 0.0
        %936 = vmatpush1.msra.mxu0 0.0
        %937 = vmatprep.subr.mxu0 0.0
        %938 = vmatpush1.msra.mxu0 0.0
        %939 = vmatprep.subr.mxu0 0.0
        %940 = vmatpush1.msra.mxu0 0.0
        %941 = vmatprep.subr.mxu0 0.0
        %942 = vmatpush1.msra.mxu0 0.0
        %943 = vmatprep.subr.mxu0 0.0
        %944 = vmatpush1.msra.mxu0 0.0
        %945 = vmatprep.subr.mxu0 0.0
        %946 = vmatpush1.msra.mxu0 0.0
        %947 = vmatprep.subr.mxu0 0.0
        %948 = vmatpush1.msra.mxu0 0.0
        %949 = vmatprep.subr.mxu0 0.0
        %950 = vmatpush1.msra.mxu0 0.0
        %951 = vmatprep.subr.mxu0 0.0
        %952 = vmatpush1.msra.mxu0 0.0
        %953 = vmatprep.subr.mxu0 0.0
        %954 = vmatpush1.msra.mxu0 0.0
        %955 = vmatprep.subr.mxu0 0.0
        %956 = vmatpush1.msra.mxu0 0.0
        %957 = vmatprep.subr.mxu0 0.0
        %958 = vmatpush1.msra.mxu0 0.0
        %959 = vmatprep.subr.mxu0 0.0
        %960 = vmatpush1.msra.mxu0 0.0
        %961 = vmatprep.subr.mxu0 0.0
        %962 = vmatpush1.msra.mxu0 0.0
        %963 = vmatprep.subr.mxu0 0.0
        %964 = vmatpush1.msra.mxu0 0.0
        %965 = vmatprep.subr.mxu0 0.0
        %966 = vmatpush1.msra.mxu0 0.0
        %967 = vmatprep.subr.mxu0 0.0
        %968 = vmatpush1.msra.mxu0 0.0
        %969 = vmatprep.subr.mxu0 0.0
        %970 = vmatpush1.msra.mxu0 0.0
        %971 = vmatprep.subr.mxu0 0.0
        %972 = vmatpush1.msra.mxu0 0.0
        %973 = vmatprep.subr.mxu0 0.0
        %974 = vmatpush1.msra.mxu0 0.0
        %975 = vmatprep.mubr.f32.mxu0 0.0
        %v976 = vand.u32 %v755, 4294901760
        %v977 = vsub.f32 %v755, %v976
        %978 = vmatmul.mubr.f32.gmra.mrb[0].mxu0 %v977
        %v979 = vpop.f32.mrb[0].mxu0
        %v980 = vadd.f32 %v906, %v979
        %v981 = vpop.f32.mrb[0].mxu0
        %982 = vdwg.mxu0
        %983 = vmatprep.subr.mxu0 0.0
        %v984 = vand.u32 %v239, 4294901760
        %985 = vmatpush1.msra.mxu0 %v984
        %986 = vmatprep.subr.mxu0 0.0
        %987 = vmatpush1.msra.mxu0 0.0
        %988 = vmatprep.subr.mxu0 0.0
        %989 = vmatpush1.msra.mxu0 0.0
        %990 = vmatprep.subr.mxu0 0.0
        %991 = vmatpush1.msra.mxu0 0.0
        %992 = vmatprep.subr.mxu0 0.0
        %993 = vmatpush1.msra.mxu0 0.0
        %994 = vmatprep.subr.mxu0 0.0
        %995 = vmatpush1.msra.mxu0 0.0
        %996 = vmatprep.subr.mxu0 0.0
        %997 = vmatpush1.msra.mxu0 0.0
        %998 = vmatprep.subr.mxu0 0.0
        %999 = vmatpush1.msra.mxu0 0.0
        %1000 = vmatprep.subr.mxu0 0.0
        %1001 = vmatpush1.msra.mxu0 0.0
        %1002 = vmatprep.subr.mxu0 0.0
        %1003 = vmatpush1.msra.mxu0 0.0
        %1004 = vmatprep.subr.mxu0 0.0
        %1005 = vmatpush1.msra.mxu0 0.0
        %1006 = vmatprep.subr.mxu0 0.0
        %1007 = vmatpush1.msra.mxu0 0.0
        %1008 = vmatprep.subr.mxu0 0.0
        %1009 = vmatpush1.msra.mxu0 0.0
        %1010 = vmatprep.subr.mxu0 0.0
        %1011 = vmatpush1.msra.mxu0 0.0
        %1012 = vmatprep.subr.mxu0 0.0
        %1013 = vmatpush1.msra.mxu0 0.0
        %1014 = vmatprep.subr.mxu0 0.0
        %1015 = vmatpush1.msra.mxu0 0.0
        %1016 = vmatprep.subr.mxu0 0.0
        %1017 = vmatpush1.msra.mxu0 0.0
        %1018 = vmatprep.subr.mxu0 0.0
        %1019 = vmatpush1.msra.mxu0 0.0
        %1020 = vmatprep.subr.mxu0 0.0
        %1021 = vmatpush1.msra.mxu0 0.0
        %1022 = vmatprep.subr.mxu0 0.0
        %1023 = vmatpush1.msra.mxu0 0.0
        %1024 = vmatprep.subr.mxu0 0.0
        %1025 = vmatpush1.msra.mxu0 0.0
        %1026 = vmatprep.subr.mxu0 0.0
        %1027 = vmatpush1.msra.mxu0 0.0
        %1028 = vmatprep.subr.mxu0 0.0
        %1029 = vmatpush1.msra.mxu0 0.0
        %1030 = vmatprep.subr.mxu0 0.0
        %1031 = vmatpush1.msra.mxu0 0.0
        %1032 = vmatprep.subr.mxu0 0.0
        %1033 = vmatpush1.msra.mxu0 0.0
        %1034 = vmatprep.subr.mxu0 0.0
        %1035 = vmatpush1.msra.mxu0 0.0
        %1036 = vmatprep.subr.mxu0 0.0
        %1037 = vmatpush1.msra.mxu0 0.0
        %1038 = vmatprep.subr.mxu0 0.0
        %1039 = vmatpush1.msra.mxu0 0.0
        %1040 = vmatprep.subr.mxu0 0.0
        %1041 = vmatpush1.msra.mxu0 0.0
        %1042 = vmatprep.subr.mxu0 0.0
        %1043 = vmatpush1.msra.mxu0 0.0
        %1044 = vmatprep.subr.mxu0 0.0
        %1045 = vmatpush1.msra.mxu0 0.0
        %1046 = vmatprep.subr.mxu0 0.0
        %1047 = vmatpush1.msra.mxu0 0.0
        %1048 = vmatprep.mubr.f32.mxu0 0.0
        %v1049 = vand.u32 %v755, 4294901760
        %v1050 = vsub.f32 %v755, %v1049
        %v1051 = vand.u32 %v1050, 4294901760
        %1052 = vmatmul.mubr.f32.gmra.mrb[0].mxu0 %v1051
        %v1053 = vpop.f32.mrb[0].mxu0
        %v1054 = vadd.f32 %v980, %v1053
        %v1055 = vpop.f32.mrb[0].mxu0
        %1056 = vdwg.mxu0
        %1057 = vmatprep.subr.mxu0 0.0
        %v1058 = vand.u32 %v239, 4294901760
        %v1059 = vsub.f32 %v239, %v1058
        %v1060 = vand.u32 %v1059, 4294901760
        %1061 = vmatpush1.msra.mxu0 %v1060
        %1062 = vmatprep.subr.mxu0 0.0
        %1063 = vmatpush1.msra.mxu0 0.0
        %1064 = vmatprep.subr.mxu0 0.0
        %1065 = vmatpush1.msra.mxu0 0.0
        %1066 = vmatprep.subr.mxu0 0.0
        %1067 = vmatpush1.msra.mxu0 0.0
        %1068 = vmatprep.subr.mxu0 0.0
        %1069 = vmatpush1.msra.mxu0 0.0
        %1070 = vmatprep.subr.mxu0 0.0
        %1071 = vmatpush1.msra.mxu0 0.0
        %1072 = vmatprep.subr.mxu0 0.0
        %1073 = vmatpush1.msra.mxu0 0.0
        %1074 = vmatprep.subr.mxu0 0.0
        %1075 = vmatpush1.msra.mxu0 0.0
        %1076 = vmatprep.subr.mxu0 0.0
        %1077 = vmatpush1.msra.mxu0 0.0
        %1078 = vmatprep.subr.mxu0 0.0
        %1079 = vmatpush1.msra.mxu0 0.0
        %1080 = vmatprep.subr.mxu0 0.0
        %1081 = vmatpush1.msra.mxu0 0.0
        %1082 = vmatprep.subr.mxu0 0.0
        %1083 = vmatpush1.msra.mxu0 0.0
        %1084 = vmatprep.subr.mxu0 0.0
        %1085 = vmatpush1.msra.mxu0 0.0
        %1086 = vmatprep.subr.mxu0 0.0
        %1087 = vmatpush1.msra.mxu0 0.0
        %1088 = vmatprep.subr.mxu0 0.0
        %1089 = vmatpush1.msra.mxu0 0.0
        %1090 = vmatprep.subr.mxu0 0.0
        %1091 = vmatpush1.msra.mxu0 0.0
        %1092 = vmatprep.subr.mxu0 0.0
        %1093 = vmatpush1.msra.mxu0 0.0
        %1094 = vmatprep.subr.mxu0 0.0
        %1095 = vmatpush1.msra.mxu0 0.0
        %1096 = vmatprep.subr.mxu0 0.0
        %1097 = vmatpush1.msra.mxu0 0.0
        %1098 = vmatprep.subr.mxu0 0.0
        %1099 = vmatpush1.msra.mxu0 0.0
        %1100 = vmatprep.subr.mxu0 0.0
        %1101 = vmatpush1.msra.mxu0 0.0
        %1102 = vmatprep.subr.mxu0 0.0
        %1103 = vmatpush1.msra.mxu0 0.0
        %1104 = vmatprep.subr.mxu0 0.0
        %1105 = vmatpush1.msra.mxu0 0.0
        %1106 = vmatprep.subr.mxu0 0.0
        %1107 = vmatpush1.msra.mxu0 0.0
        %1108 = vmatprep.subr.mxu0 0.0
        %1109 = vmatpush1.msra.mxu0 0.0
        %1110 = vmatprep.subr.mxu0 0.0
        %1111 = vmatpush1.msra.mxu0 0.0
        %1112 = vmatprep.subr.mxu0 0.0
        %1113 = vmatpush1.msra.mxu0 0.0
        %1114 = vmatprep.subr.mxu0 0.0
        %1115 = vmatpush1.msra.mxu0 0.0
        %1116 = vmatprep.subr.mxu0 0.0
        %1117 = vmatpush1.msra.mxu0 0.0
        %1118 = vmatprep.subr.mxu0 0.0
        %1119 = vmatpush1.msra.mxu0 0.0
        %1120 = vmatprep.subr.mxu0 0.0
        %1121 = vmatpush1.msra.mxu0 0.0
        %1122 = vmatprep.subr.mxu0 0.0
        %1123 = vmatpush1.msra.mxu0 0.0
        %1124 = vmatprep.mubr.f32.mxu0 0.0
        %v1125 = vand.u32 %v755, 4294901760
        %1126 = vmatmul.mubr.f32.gmra.mrb[0].mxu0 %v1125
        %v1127 = vpop.f32.mrb[0].mxu0
        %v1128 = vadd.f32 %v1054, %v1127
        %v1129 = vpop.f32.mrb[0].mxu0
        %1130 = vdwg.mxu0
        %1131 = vmatprep.subr.mxu0 0.0
        %v1132 = vand.u32 %v239, 4294901760
        %1133 = vmatpush1.msra.mxu0 %v1132
        %1134 = vmatprep.subr.mxu0 0.0
        %1135 = vmatpush1.msra.mxu0 0.0
        %1136 = vmatprep.subr.mxu0 0.0
        %1137 = vmatpush1.msra.mxu0 0.0
        %1138 = vmatprep.subr.mxu0 0.0
        %1139 = vmatpush1.msra.mxu0 0.0
        %1140 = vmatprep.subr.mxu0 0.0
        %1141 = vmatpush1.msra.mxu0 0.0
        %1142 = vmatprep.subr.mxu0 0.0
        %1143 = vmatpush1.msra.mxu0 0.0
        %1144 = vmatprep.subr.mxu0 0.0
        %1145 = vmatpush1.msra.mxu0 0.0
        %1146 = vmatprep.subr.mxu0 0.0
        %1147 = vmatpush1.msra.mxu0 0.0
        %1148 = vmatprep.subr.mxu0 0.0
        %1149 = vmatpush1.msra.mxu0 0.0
        %1150 = vmatprep.subr.mxu0 0.0
        %1151 = vmatpush1.msra.mxu0 0.0
        %1152 = vmatprep.subr.mxu0 0.0
        %1153 = vmatpush1.msra.mxu0 0.0
        %1154 = vmatprep.subr.mxu0 0.0
        %1155 = vmatpush1.msra.mxu0 0.0
        %1156 = vmatprep.subr.mxu0 0.0
        %1157 = vmatpush1.msra.mxu0 0.0
        %1158 = vmatprep.subr.mxu0 0.0
        %1159 = vmatpush1.msra.mxu0 0.0
        %1160 = vmatprep.subr.mxu0 0.0
        %1161 = vmatpush1.msra.mxu0 0.0
        %1162 = vmatprep.subr.mxu0 0.0
        %1163 = vmatpush1.msra.mxu0 0.0
        %1164 = vmatprep.subr.mxu0 0.0
        %1165 = vmatpush1.msra.mxu0 0.0
        %1166 = vmatprep.subr.mxu0 0.0
        %1167 = vmatpush1.msra.mxu0 0.0
        %1168 = vmatprep.subr.mxu0 0.0
        %1169 = vmatpush1.msra.mxu0 0.0
        %1170 = vmatprep.subr.mxu0 0.0
        %1171 = vmatpush1.msra.mxu0 0.0
        %1172 = vmatprep.subr.mxu0 0.0
        %1173 = vmatpush1.msra.mxu0 0.0
        %1174 = vmatprep.subr.mxu0 0.0
        %1175 = vmatpush1.msra.mxu0 0.0
        %1176 = vmatprep.subr.mxu0 0.0
        %1177 = vmatpush1.msra.mxu0 0.0
        %1178 = vmatprep.subr.mxu0 0.0
        %1179 = vmatpush1.msra.mxu0 0.0
        %1180 = vmatprep.subr.mxu0 0.0
        %1181 = vmatpush1.msra.mxu0 0.0
        %1182 = vmatprep.subr.mxu0 0.0
        %1183 = vmatpush1.msra.mxu0 0.0
        %1184 = vmatprep.subr.mxu0 0.0
        %1185 = vmatpush1.msra.mxu0 0.0
        %1186 = vmatprep.subr.mxu0 0.0
        %1187 = vmatpush1.msra.mxu0 0.0
        %1188 = vmatprep.subr.mxu0 0.0
        %1189 = vmatpush1.msra.mxu0 0.0
        %1190 = vmatprep.subr.mxu0 0.0
        %1191 = vmatpush1.msra.mxu0 0.0
        %1192 = vmatprep.subr.mxu0 0.0
        %1193 = vmatpush1.msra.mxu0 0.0
        %1194 = vmatprep.subr.mxu0 0.0
        %1195 = vmatpush1.msra.mxu0 0.0
        %1196 = vmatprep.mubr.f32.mxu0 0.0
        %v1197 = vand.u32 %v755, 4294901760
        %1198 = vmatmul.mubr.f32.gmra.mrb[0].mxu0 %v1197
        %v1199 = vpop.f32.mrb[0].mxu0
        %v1200 = vadd.f32 %v1128, %v1199
        %v1201 = vpop.f32.mrb[0].mxu0
        %1202 = vdwg.mxu0
        %v1203 = vadd.f32 %v752, %v1200
        %vm1204 = vcmask 257024
        %1205 = vst.msk [vmem:[%s216] sm:$0xf] %vm1204, %v1203
        %s1206 = sand.u32 %s91, 1
        %s1207 = scalar_lea.sflag [#allocation4], %s1206
        %s1208 = sand.u32 %s91, 1
        %s1209 = smul.addr %s1208, 4
        %s1210 = scalar_lea.vmem [#allocation7], %s1209
        %p1211 = scmp.lt.s32.totalorder %s26, 1
        %s1212 = scalar_select %p1211, %s26, 1
        %p1213 = scmp.lt.s32.totalorder %s27, 0
        %s1214 = scalar_select %p1213, %s27, 0
        %s1215 = sadd.s32 %s1214, %s1212
        %s1216 = smul.addr %s1215, 8
        %s1217 = scalar_lea.vmem %s3, %s1216
        // Predicated region
        $region41: #{tpu_custom_call.1} parent=27 // pred_check
          %p1218 = pneg %p101
        $region42: #{tpu_custom_call.1} parent=27 // pred_check_branch
          %1220 = sbr.rel (%p1218) target = $region44
        $region43: #{tpu_custom_call.1} parent=27 // pred_region
          %s1222 = ssub.s32 64, 64
          %1223 = vsyncadd %s1207, %s1222
          %s1224 = smul.addr %s26, 64
          %s1225 = scalar_lea.hbm %s2, %s1224
          %s1227 = sshll.u32 %s1210, 4
          %s1228 = int_to_ptr.vmem [resolvable:$true] %s1227
          %1230 = dma.vmem_to_hbm [thread:$0]  %s1228, 64, %s1225, %s1207
        $region44: #{tpu_custom_call.1} parent=27 // pred_fallthru
          _
        // Predicated region
        $region45: #{tpu_custom_call.1} parent=27 // pred_check
          %p1231 = pneg %p129
        $region46: #{tpu_custom_call.1} parent=27 // pred_check_branch
          %1233 = sbr.rel (%p1231) target = $region48
        $region47: #{tpu_custom_call.1} parent=27 // pred_region
          _
        $region48: #{tpu_custom_call.1} parent=27 // pred_fallthru
          _
      $region28: #{tpu_custom_call.1} parent=5 // pred_fallthru
        _
      %p1234 = scmp.le.s32.totalorder 2, %s17
      // Predicated region
      $region49: #{tpu_custom_call.1} parent=5 // pred_check
        %p1235 = pneg %p1234
      $region50: #{tpu_custom_call.1} parent=5 // pred_check_branch
        %1237 = sbr.rel (%p1235) target = $region52
      $region51: #{tpu_custom_call.1} parent=5 // pred_region
        %s1238 = ssub.s32 %s17, 2
        // Predicated region
        $region53: #{tpu_custom_call.1} parent=51 // pred_check
          %p1239 = pneg %p107
        $region54: #{tpu_custom_call.1} parent=51 // pred_check_branch
          %1241 = sbr.rel (%p1239) target = $region56
        $region55: #{tpu_custom_call.1} parent=51 // pred_region
          %s1242 = sand.u32 %s92, 1
          %s1243 = scalar_lea.sflag [#allocation4], %s1242
          %s1244 = sand.u32 %s92, 1
          %s1245 = smul.addr %s1244, 4
          %s1246 = scalar_lea.vmem [#allocation7], %s1245
          %1247 = dma.done %s1243, 64
        $region56: #{tpu_custom_call.1} parent=51 // pred_fallthru
          _
        // Predicated region
        $region57: #{tpu_custom_call.1} parent=51 // pred_check
          %p1248 = pneg %p135
        $region58: #{tpu_custom_call.1} parent=51 // pred_check_branch
          %1250 = sbr.rel (%p1248) target = $region60
        $region59: #{tpu_custom_call.1} parent=51 // pred_region
          %p1251 = scmp.lt.s32.totalorder %s28, 1
          %s1252 = scalar_select %p1251, %s28, 1
          %p1253 = scmp.lt.s32.totalorder %s29, 0
          %s1254 = scalar_select %p1253, %s29, 0
          %s1255 = sadd.s32 %s1254, %s1252
          %s1256 = smul.addr %s1255, 8
          %s1257 = scalar_lea.vmem %s3, %s1256
        $region60: #{tpu_custom_call.1} parent=51 // pred_fallthru
          _
      $region52: #{tpu_custom_call.1} parent=5 // pred_fallthru
        _
    $region6: #{tpu_custom_call.1} parent=1 // loop_footer
      %s21 = sadd.s32 1, %s17
    $region7: #{tpu_custom_call.1} parent=1 // loop_footer_branch
      %16 = sbr.rel target = $region3
    $region8: #{tpu_custom_call.1} parent=1 // loop_exit
      _
    %1258 = vsyncpa [#allocation3], 1
    %s1259 = scalar_lea.sflag [#allocation3], 1
    %1260 = vsyncpa %s1259, 1
    %1261 = vsyncpa [#allocation6], 1
    %s1262 = scalar_lea.sflag [#allocation6], 1
    %1263 = vsyncpa %s1262, 1
    %1264 = vsyncpa [#allocation4], 1
    %s1265 = scalar_lea.sflag [#allocation4], 1
    %1266 = vsyncpa %s1265, 1

</llo_original>
